<compile_context>
chip_gen: v5e
topology: v5e:2x2
jax: 0.10.0
libtpu: 0.0.40
codegen_flags: <defaults>
</compile_context>

<pallas_src>
import jax
import jax.numpy as jnp
from jax.experimental import pallas as pl
from jax.experimental.pallas import tpu as pltpu

C_IN = 256          # fixed by the module: nn.Conv2d(256, 3, kernel_size=1)
C_OUT = 3
C_SUB = 8           # output channels padded to one sublane group
EPS = 1e-8          # torch.nn.CosineSimilarity default eps


def _cos_kernel(x1_ref, x2_ref, w_ref, b_ref, out_ref):
    # 1x1 conv as matmul on the MXU: (8, 256) @ (256, tile) -> (8, tile),
    # channels live on the sublane axis (rows 3..7 are zero padding).
    z1 = jnp.dot(w_ref[...], x1_ref[...],
                 preferred_element_type=jnp.float32) + b_ref[...]
    z2 = jnp.dot(w_ref[...], x2_ref[...],
                 preferred_element_type=jnp.float32) + b_ref[...]

    # Cosine similarity across the (sublane) channel axis, per pixel.
    dot = jnp.sum(z1 * z2, axis=0, keepdims=True)     # (1, tile)
    ss1 = jnp.sum(z1 * z1, axis=0, keepdims=True)
    ss2 = jnp.sum(z2 * z2, axis=0, keepdims=True)
    # torch: dot / max(||z1||*||z2||, eps)  ==  dot * rsqrt(max(ss1*ss2, eps^2))
    cos = dot * jax.lax.rsqrt(jnp.maximum(ss1 * ss2, EPS * EPS))

    out_ref[...] = cos                                 # lane-dense f32 write


def contrastive_loss_direction(f1, f2, weight, bias, *, tile_hw=2048):
    """f1, f2: (B, 256, H, W) NCHW (f32 or bf16). weight: (3,256,1,1). bias: (3,)."""
    B, C, H, W = f1.shape
    assert C == C_IN
    HW = H * W
    # Full extent if it fits in one tile, otherwise a 128-multiple lane tile;
    # ragged last tiles are handled by Pallas boundary masking.
    tile = HW if HW <= tile_hw else tile_hw
    nt = pl.cdiv(HW, tile)

    # NCHW -> (B, C, H*W): contiguous reshape, no HBM transpose pass.
    x1 = f1.reshape(B, C_IN, HW)
    x2 = f2.reshape(B, C_IN, HW)
    dt = x1.dtype

    # Conv weight (3, 256, 1, 1) -> (8, 256) sublane-padded matmul weight.
    w_mat = weight.reshape(C_OUT, C_IN).astype(dt)
    w_pad = jnp.zeros((C_SUB, C_IN), dt).at[:C_OUT, :].set(w_mat)
    b_pad = jnp.zeros((C_SUB, 1), jnp.float32).at[:C_OUT, 0].set(
        bias.astype(jnp.float32))

    cos_map = pl.pallas_call(
        _cos_kernel,
        out_shape=jax.ShapeDtypeStruct((B, 1, HW), jnp.float32),
        grid_spec=pltpu.PrefetchScalarGridSpec(
            num_scalar_prefetch=0,
            grid=(B, nt),
            in_specs=[
                pl.BlockSpec((None, C_IN, tile), lambda b, t: (b, 0, t)),
                pl.BlockSpec((None, C_IN, tile), lambda b, t: (b, 0, t)),
                pl.BlockSpec((C_SUB, C_IN), lambda b, t: (0, 0)),
                pl.BlockSpec((C_SUB, 1), lambda b, t: (0, 0)),
            ],
            out_specs=pl.BlockSpec((None, 1, tile), lambda b, t: (b, 0, t)),
        ),
        compiler_params=pltpu.CompilerParams(
            dimension_semantics=("parallel", "parallel")),
    )(x1, x2, w_pad, b_pad)

    # Tiny final reduction (B*H*W f32) done by XLA.
    return jnp.mean(cos_map)


def _reference_loss(f1, f2, weight, bias):
    """Pure-JAX f32 reference matching the PyTorch forward (mode='direction')."""
    x1 = f1.astype(jnp.float32)
    x2 = f2.astype(jnp.float32)
    w = weight.reshape(C_OUT, C_IN).astype(jnp.float32)
    b = bias.astype(jnp.float32)
    z1 = jnp.einsum('bchw,oc->bohw', x1, w) + b[None, :, None, None]
    z2 = jnp.einsum('bchw,oc->bohw', x2, w) + b[None, :, None, None]
    dot = jnp.sum(z1 * z2, axis=1)
    ss1 = jnp.sum(z1 * z1, axis=1)
    ss2 = jnp.sum(z2 * z2, axis=1)
    cos = dot / jnp.sqrt(jnp.maximum(ss1 * ss2, EPS * EPS))
    return jnp.mean(cos)


if __name__ == "__main__":
    key = jax.random.PRNGKey(0)
    k1, k2, k3, k4 = jax.random.split(key, 4)

    B, H, W = 2, 16, 16                       # small spatial; C_IN fixed at 256
    # bf16 features: native MXU dtype, halves the bytes the kernel streams.
    f1 = jax.random.normal(k1, (B, C_IN, H, W), jnp.float32).astype(jnp.bfloat16)
    f2 = jax.random.normal(k2, (B, C_IN, H, W), jnp.float32).astype(jnp.bfloat16)

    # Deterministic "Conv2d(256, 3, 1)" parameters (synthetic, not a checkpoint),
    # rounded to bf16-representable values so the f32 reference sees the exact
    # same numbers the kernel streams.
    fan_in = C_IN * 1 * 1
    bound = 1.0 / (fan_in ** 0.5)
    conv_w = jax.random.uniform(k3, (C_OUT, C_IN, 1, 1), jnp.float32,
                                minval=-bound, maxval=bound)
    conv_w = conv_w.astype(jnp.bfloat16).astype(jnp.float32)
    conv_b = jax.random.uniform(k4, (C_OUT,), jnp.float32,
                                minval=-bound, maxval=bound)
    conv_b = conv_b.astype(jnp.bfloat16).astype(jnp.float32)

    loss = jax.jit(contrastive_loss_direction)(f1, f2, conv_w, conv_b)
    loss = jax.block_until_ready(loss)

    ref = _reference_loss(f1, f2, conv_w, conv_b)
    assert jnp.allclose(loss, ref, atol=1e-3, rtol=1e-3), (loss, ref)

    print("KERNEL_OK")
</pallas_src>

<mosaic_0001>
module attributes {stable_mosaic.version = 11 : i64} {
  func.func @_cos_kernel(%arg0: i32, %arg1: i32, %arg2: memref<1x256x256xbf16, #tpu.memory_space<vmem>>, %arg3: memref<1x256x256xbf16, #tpu.memory_space<vmem>>, %arg4: memref<8x256xbf16, #tpu.memory_space<vmem>>, %arg5: memref<8x1xf32, #tpu.memory_space<vmem>>, %arg6: memref<1x1x256xf32, #tpu.memory_space<vmem>>) attributes {dimension_semantics = [#tpu.dimension_semantics<parallel>, #tpu.dimension_semantics<parallel>], iteration_bounds = array<i64: 2, 1>, scalar_prefetch = 0 : i64, scratch_operands = 0 : i64, tpu.core_type = #tpu.core_type<tc>, window_params = [{transform_indices = @transform_0, window_bounds = array<i64: 1, 256, 256>}, {transform_indices = @transform_1, window_bounds = array<i64: 1, 256, 256>}, {pipeline_mode = #tpu.pipeline_mode<synchronous>, transform_indices = @transform_2, window_bounds = array<i64: 8, 256>}, {pipeline_mode = #tpu.pipeline_mode<synchronous>, transform_indices = @transform_3, window_bounds = array<i64: 8, 1>}, {transform_indices = @transform_4, window_bounds = array<i64: 1, 1, 256>}]} {
    %c0 = arith.constant 0 : index
    %c0_0 = arith.constant 0 : index
    %0 = vector.load %arg4[%c0, %c0_0] : memref<8x256xbf16, #tpu.memory_space<vmem>>, vector<8x256xbf16>
    %c0_1 = arith.constant 0 : index
    %c0_2 = arith.constant 0 : index
    %c0_3 = arith.constant 0 : index
    %1 = vector.load %arg2[%c0_1, %c0_2, %c0_3] : memref<1x256x256xbf16, #tpu.memory_space<vmem>>, vector<1x256x256xbf16>
    %2 = vector.shape_cast %1 : vector<1x256x256xbf16> to vector<256x256xbf16>
    %cst = arith.constant dense<0.000000e+00> : vector<8x256xf32>
    %3 = tpu.matmul %0, %2, %cst {dimension_numbers = #tpu.dot_dimension_numbers<[1], [0], [0], [1], [0, 0, 1, 1], [], []>} : vector<8x256xbf16>, vector<256x256xbf16>, vector<8x256xf32> -> vector<8x256xf32>
    %c0_4 = arith.constant 0 : index
    %c0_5 = arith.constant 0 : index
    %4 = vector.load %arg5[%c0_4, %c0_5] : memref<8x1xf32, #tpu.memory_space<vmem>>, vector<8x1xf32>
    %5 = vector.broadcast %4 : vector<8x1xf32> to vector<8x256xf32>
    %6 = arith.addf %3, %5 : vector<8x256xf32>
    %c0_6 = arith.constant 0 : index
    %c0_7 = arith.constant 0 : index
    %7 = vector.load %arg4[%c0_6, %c0_7] : memref<8x256xbf16, #tpu.memory_space<vmem>>, vector<8x256xbf16>
    %c0_8 = arith.constant 0 : index
    %c0_9 = arith.constant 0 : index
    %c0_10 = arith.constant 0 : index
    %8 = vector.load %arg3[%c0_8, %c0_9, %c0_10] : memref<1x256x256xbf16, #tpu.memory_space<vmem>>, vector<1x256x256xbf16>
    %9 = vector.shape_cast %8 : vector<1x256x256xbf16> to vector<256x256xbf16>
    %cst_11 = arith.constant dense<0.000000e+00> : vector<8x256xf32>
    %10 = tpu.matmul %7, %9, %cst_11 {dimension_numbers = #tpu.dot_dimension_numbers<[1], [0], [0], [1], [0, 0, 1, 1], [], []>} : vector<8x256xbf16>, vector<256x256xbf16>, vector<8x256xf32> -> vector<8x256xf32>
    %c0_12 = arith.constant 0 : index
    %c0_13 = arith.constant 0 : index
    %11 = vector.load %arg5[%c0_12, %c0_13] : memref<8x1xf32, #tpu.memory_space<vmem>>, vector<8x1xf32>
    %12 = vector.broadcast %11 : vector<8x1xf32> to vector<8x256xf32>
    %13 = arith.addf %10, %12 : vector<8x256xf32>
    %14 = arith.mulf %6, %13 : vector<8x256xf32>
    %cst_14 = arith.constant dense<0.000000e+00> : vector<256xf32>
    %15 = vector.multi_reduction <add>, %14, %cst_14 [0] : vector<8x256xf32> to vector<256xf32>
    %16 = vector.shape_cast %15 : vector<256xf32> to vector<1x256xf32>
    %17 = arith.mulf %6, %6 : vector<8x256xf32>
    %cst_15 = arith.constant dense<0.000000e+00> : vector<256xf32>
    %18 = vector.multi_reduction <add>, %17, %cst_15 [0] : vector<8x256xf32> to vector<256xf32>
    %19 = vector.shape_cast %18 : vector<256xf32> to vector<1x256xf32>
    %20 = arith.mulf %13, %13 : vector<8x256xf32>
    %cst_16 = arith.constant dense<0.000000e+00> : vector<256xf32>
    %21 = vector.multi_reduction <add>, %20, %cst_16 [0] : vector<8x256xf32> to vector<256xf32>
    %22 = vector.shape_cast %21 : vector<256xf32> to vector<1x256xf32>
    %23 = arith.mulf %19, %22 : vector<1x256xf32>
    %cst_17 = arith.constant 1.000000e-16 : f32
    %24 = vector.broadcast %cst_17 : f32 to vector<1x256xf32>
    %25 = arith.maximumf %23, %24 : vector<1x256xf32>
    %26 = math.rsqrt %25 : vector<1x256xf32>
    %27 = arith.mulf %16, %26 : vector<1x256xf32>
    %c0_18 = arith.constant 0 : index
    %c0_19 = arith.constant 0 : index
    %c0_20 = arith.constant 0 : index
    %28 = vector.load %arg6[%c0_18, %c0_19, %c0_20] : memref<1x1x256xf32, #tpu.memory_space<vmem>>, vector<1x1x256xf32>
    %29 = vector.shape_cast %28 : vector<1x1x256xf32> to vector<1x256xf32>
    %30 = vector.shape_cast %27 : vector<1x256xf32> to vector<1x1x256xf32>
    tpu.vector_store %arg6[%c0_18, %c0_19, %c0_20], %30 {strides = array<i32>} : memref<1x1x256xf32, #tpu.memory_space<vmem>>, vector<1x1x256xf32>,
    return
  }
  func.func @transform_0(%arg0: i32, %arg1: i32) -> (i32, i32, i32) {
    %c0_i32 = arith.constant 0 : i32
    %c0_i32_0 = arith.constant 0 : i32
    return %arg0, %c0_i32, %arg1 : i32, i32, i32
  }
  func.func @transform_1(%arg0: i32, %arg1: i32) -> (i32, i32, i32) {
    %c0_i32 = arith.constant 0 : i32
    %c0_i32_0 = arith.constant 0 : i32
    return %arg0, %c0_i32, %arg1 : i32, i32, i32
  }
  func.func @transform_2(%arg0: i32, %arg1: i32) -> (i32, i32) {
    %c0_i32 = arith.constant 0 : i32
    %c0_i32_0 = arith.constant 0 : i32
    %c0_i32_1 = arith.constant 0 : i32
    return %c0_i32, %c0_i32_0 : i32, i32
  }
  func.func @transform_3(%arg0: i32, %arg1: i32) -> (i32, i32) {
    %c0_i32 = arith.constant 0 : i32
    %c0_i32_0 = arith.constant 0 : i32
    %c0_i32_1 = arith.constant 0 : i32
    return %c0_i32, %c0_i32_0 : i32, i32
  }
  func.func @transform_4(%arg0: i32, %arg1: i32) -> (i32, i32, i32) {
    %c0_i32 = arith.constant 0 : i32
    %c0_i32_0 = arith.constant 0 : i32
    return %arg0, %c0_i32, %arg1 : i32, i32, i32
  }
}

</mosaic_0001>

<llo_original>
// kernel: contrastive_loss_direction.1
$region0: #{contrastive_loss_direction.1}
  #allocation0 [shape = 'u32[]', space=smem, size = 0x4, offset = 0x4, fixed_abs, tag = 'smem constant byte address 0x4 - core index']
  #allocation1 [shape = 'u32[72,128]{1,0:T(1,128)}', space=vmem, size = 0x9000, scoped, tag = 'internal scratch']
  %s0 = inlined_call_operand.vmem [shape: bf16[2,256,256], index: 0, kind: input, shape index: {}]
  %s1 = inlined_call_operand.vmem [shape: bf16[2,256,256], index: 1, kind: input, shape index: {}]
  %s2 = inlined_call_operand.vmem [shape: bf16[8,256], index: 2, kind: input, shape index: {}]
  %s3 = inlined_call_operand.vmem [shape: f32[8,1], index: 3, kind: input, shape index: {}]
  %s4 = inlined_call_operand.vmem [shape: f32[2,1,256], index: 4, kind: output, shape index: {}]
  %s5 = sld [smem:[#allocation0]]
  $region49: #{contrastive_loss_direction.1} parent=0
    _
  %s7 = ssub.s32 1, %s5
  %s8 = scalar_select 0, %s7, %s5
  loop: start=0, step=1, limit=4
  $region2: #{contrastive_loss_direction.1} parent=0 // loop_pre_header
    _
  $region3: #{contrastive_loss_direction.1} parent=0 // loop_header
    %s10 = sphi 0, %s14
    %p11 = scmp.ge.s32.totalorder %s10, 4
    %s17 = sphi 0, %s29
    %s18 = sphi 0, %s25
    %s19 = sphi 0, %s17
    %s20 = sphi 0, %s18
    %s21 = sphi 0, %s19
    %s22 = sphi 0, %s20
    %s34 = sphi 0, %s36
    %s37 = sphi 0, %s34
    %s38 = sphi 0, %s37
    %s54 = sphi 0, %s38
    %s62 = sphi 0, %s64
    %s65 = sphi 0, %s62
    %s66 = sphi 0, %s65
    %s82 = sphi 0, %s66
    %s86 = sphi 0, %s86
    %s88 = sphi 0, %s86
    %s89 = sphi 0, %s88
    %s103 = sphi 0, %s89
    %s107 = sphi 0, %s107
    %s109 = sphi 0, %s107
    %s110 = sphi 0, %s109
    %s124 = sphi 0, %s110
    %s132 = sphi 0, %s134
    %s135 = sphi 0, %s132
    %s136 = sphi 0, %s135
    %s152 = sphi 0, %s136
  $region4: #{contrastive_loss_direction.1} parent=0 // loop_header_branch
    %13 = sbr.rel (%p11) target = $region8
  $region5: #{contrastive_loss_direction.1} parent=0 // loop_body
    %s15 = ssub.s32 %s10, 1
    %s16 = ssub.s32 %s10, 2
    %s23 = sadd.s32 1, %s18
    %p24 = scmp.ge.s32.totalorder %s23, 1
    %s25 = scalar_select %p24, 0, %s23
    %s26 = sadd.s32 1, %s17
    %s27 = scalar_select %p24, %s26, %s17
    %p28 = scmp.ge.s32.totalorder %s27, 2
    %s29 = scalar_select %p28, 0, %s27
    %s30 = ssub.s32 %s17, %s29
    %s31 = ssub.s32 %s18, %s25
    %s32 = sor.u32 %s30, %s31
    %p33 = scmp.eq.s32.totalorder %s32, 0
    %s35 = sadd.s32 %s34, 1
    %s36 = scalar_select %p33, %s34, %s35
    %p39 = pneg %p33
    %p40 = scmp.eq.s32.totalorder %s10, 1
    %p41 = por %p39, %p40
    %p42 = scmp.ne.s32.totalorder %s34, %s37
    %p43 = scmp.eq.s32.totalorder %s10, 0
    %p44 = por %p42, %p43
    %p45 = scmp.ne.s32.totalorder %s34, %s37
    %p46 = scmp.eq.s32.totalorder %s15, 1
    %p47 = por %p45, %p46
    %p48 = scmp.ne.s32.totalorder %s37, %s38
    %p49 = scmp.eq.s32.totalorder %s15, 0
    %p50 = por %p48, %p49
    %p51 = scmp.ne.s32.totalorder %s37, %s38
    %p52 = scmp.eq.s32.totalorder %s16, 1
    %p53 = por %p51, %p52
    %p55 = scmp.ne.s32.totalorder %s38, %s54
    %p56 = scmp.eq.s32.totalorder %s16, 0
    %p57 = por %p55, %p56
    %s58 = ssub.s32 %s17, %s29
    %s59 = ssub.s32 %s18, %s25
    %s60 = sor.u32 %s58, %s59
    %p61 = scmp.eq.s32.totalorder %s60, 0
    %s63 = sadd.s32 %s62, 1
    %s64 = scalar_select %p61, %s62, %s63
    %p67 = pneg %p61
    %p68 = scmp.eq.s32.totalorder %s10, 1
    %p69 = por %p67, %p68
    %p70 = scmp.ne.s32.totalorder %s62, %s65
    %p71 = scmp.eq.s32.totalorder %s10, 0
    %p72 = por %p70, %p71
    %p73 = scmp.ne.s32.totalorder %s62, %s65
    %p74 = scmp.eq.s32.totalorder %s15, 1
    %p75 = por %p73, %p74
    %p76 = scmp.ne.s32.totalorder %s65, %s66
    %p77 = scmp.eq.s32.totalorder %s15, 0
    %p78 = por %p76, %p77
    %p79 = scmp.ne.s32.totalorder %s65, %s66
    %p80 = scmp.eq.s32.totalorder %s16, 1
    %p81 = por %p79, %p80
    %p83 = scmp.ne.s32.totalorder %s66, %s82
    %p84 = scmp.eq.s32.totalorder %s16, 0
    %p85 = por %p83, %p84
    %s87 = sadd.s32 %s86, 1
    %p90 = scmp.eq.s32.totalorder %s10, 1
    %p91 = scmp.ne.s32.totalorder %s86, %s88
    %p92 = scmp.eq.s32.totalorder %s10, 0
    %p93 = por %p91, %p92
    %p94 = scmp.ne.s32.totalorder %s86, %s88
    %p95 = scmp.eq.s32.totalorder %s15, 1
    %p96 = por %p94, %p95
    %p97 = scmp.ne.s32.totalorder %s88, %s89
    %p98 = scmp.eq.s32.totalorder %s15, 0
    %p99 = por %p97, %p98
    %p100 = scmp.ne.s32.totalorder %s88, %s89
    %p101 = scmp.eq.s32.totalorder %s16, 1
    %p102 = por %p100, %p101
    %p104 = scmp.ne.s32.totalorder %s89, %s103
    %p105 = scmp.eq.s32.totalorder %s16, 0
    %p106 = por %p104, %p105
    %s108 = sadd.s32 %s107, 1
    %p111 = scmp.eq.s32.totalorder %s10, 1
    %p112 = scmp.ne.s32.totalorder %s107, %s109
    %p113 = scmp.eq.s32.totalorder %s10, 0
    %p114 = por %p112, %p113
    %p115 = scmp.ne.s32.totalorder %s107, %s109
    %p116 = scmp.eq.s32.totalorder %s15, 1
    %p117 = por %p115, %p116
    %p118 = scmp.ne.s32.totalorder %s109, %s110
    %p119 = scmp.eq.s32.totalorder %s15, 0
    %p120 = por %p118, %p119
    %p121 = scmp.ne.s32.totalorder %s109, %s110
    %p122 = scmp.eq.s32.totalorder %s16, 1
    %p123 = por %p121, %p122
    %p125 = scmp.ne.s32.totalorder %s110, %s124
    %p126 = scmp.eq.s32.totalorder %s16, 0
    %p127 = por %p125, %p126
    %s128 = ssub.s32 %s17, %s29
    %s129 = ssub.s32 %s18, %s25
    %s130 = sor.u32 %s128, %s129
    %p131 = scmp.eq.s32.totalorder %s130, 0
    %s133 = sadd.s32 %s132, 1
    %s134 = scalar_select %p131, %s132, %s133
    %p137 = pneg %p131
    %p138 = scmp.eq.s32.totalorder %s10, 1
    %p139 = por %p137, %p138
    %p140 = scmp.ne.s32.totalorder %s132, %s135
    %p141 = scmp.eq.s32.totalorder %s10, 0
    %p142 = por %p140, %p141
    %p143 = scmp.ne.s32.totalorder %s132, %s135
    %p144 = scmp.eq.s32.totalorder %s15, 1
    %p145 = por %p143, %p144
    %p146 = scmp.ne.s32.totalorder %s135, %s136
    %p147 = scmp.eq.s32.totalorder %s15, 0
    %p148 = por %p146, %p147
    %p149 = scmp.ne.s32.totalorder %s135, %s136
    %p150 = scmp.eq.s32.totalorder %s16, 1
    %p151 = por %p149, %p150
    %p153 = scmp.ne.s32.totalorder %s136, %s152
    %p154 = scmp.eq.s32.totalorder %s16, 0
    %p155 = por %p153, %p154
    %p156 = scmp.le.s32.totalorder 1, %s10
    %p157 = scmp.lt.s32.totalorder %s10, 3
    %p158 = pnand %p156, %p157
    %p159 = pneg %p158
    // Predicated region
    $region9: #{contrastive_loss_direction.1} parent=5 // pred_check
      _
    $region10: #{contrastive_loss_direction.1} parent=5 // pred_check_branch
      %161 = sbr.rel (%p158) target = $region12
    $region11: #{contrastive_loss_direction.1} parent=5 // pred_region
      %s162 = ssub.s32 %s10, 1
      // Predicated region
      $region13: #{contrastive_loss_direction.1} parent=11 // pred_check
        %p163 = pneg %p99
      $region14: #{contrastive_loss_direction.1} parent=11 // pred_check_branch
        %165 = sbr.rel (%p163) target = $region16
      $region15: #{contrastive_loss_direction.1} parent=11 // pred_region
        _
      $region16: #{contrastive_loss_direction.1} parent=11 // pred_fallthru
        _
      // Predicated region
      $region17: #{contrastive_loss_direction.1} parent=11 // pred_check
        %p166 = pneg %p120
      $region18: #{contrastive_loss_direction.1} parent=11 // pred_check_branch
        %168 = sbr.rel (%p166) target = $region20
      $region19: #{contrastive_loss_direction.1} parent=11 // pred_region
        _
      $region20: #{contrastive_loss_direction.1} parent=11 // pred_fallthru
        _
    $region12: #{contrastive_loss_direction.1} parent=5 // pred_fallthru
      _
    %p169 = scmp.lt.s32.totalorder %s10, 2
    // Predicated region
    $region21: #{contrastive_loss_direction.1} parent=5 // pred_check
      %p170 = pneg %p169
    $region22: #{contrastive_loss_direction.1} parent=5 // pred_check_branch
      %172 = sbr.rel (%p170) target = $region24
    $region23: #{contrastive_loss_direction.1} parent=5 // pred_region
      // Predicated region
      $region25: #{contrastive_loss_direction.1} parent=23 // pred_check
        %p173 = pneg %p44
      $region26: #{contrastive_loss_direction.1} parent=23 // pred_check_branch
        %175 = sbr.rel (%p173) target = $region28
      $region27: #{contrastive_loss_direction.1} parent=23 // pred_region
        %s176 = smul.u32 2, %s18
        %p177 = scmp.lt.s32.totalorder %s17, 1
        %s178 = scalar_select %p177, %s17, 1
        %p179 = scmp.lt.s32.totalorder %s176, 1
        %s180 = scalar_select %p179, %s176, 1
        %s181 = smul.addr %s178, 64
        %s182 = sadd.s32 %s180, %s181
        %s183 = smul.addr %s182, 4
        %s184 = scalar_lea.vmem %s0, %s183
        %s185 = smul.u32 2, %s18
      $region28: #{contrastive_loss_direction.1} parent=23 // pred_fallthru
        _
      // Predicated region
      $region29: #{contrastive_loss_direction.1} parent=23 // pred_check
        %p186 = pneg %p72
      $region30: #{contrastive_loss_direction.1} parent=23 // pred_check_branch
        %188 = sbr.rel (%p186) target = $region32
      $region31: #{contrastive_loss_direction.1} parent=23 // pred_region
        %s189 = smul.u32 2, %s18
        %p190 = scmp.lt.s32.totalorder %s17, 1
        %s191 = scalar_select %p190, %s17, 1
        %p192 = scmp.lt.s32.totalorder %s189, 1
        %s193 = scalar_select %p192, %s189, 1
        %s194 = smul.addr %s191, 64
        %s195 = sadd.s32 %s193, %s194
        %s196 = smul.addr %s195, 4
        %s197 = scalar_lea.vmem %s1, %s196
        %s198 = smul.u32 2, %s18
      $region32: #{contrastive_loss_direction.1} parent=23 // pred_fallthru
        _
    $region24: #{contrastive_loss_direction.1} parent=5 // pred_fallthru
      _
    %p199 = scmp.le.s32.totalorder 1, %s10
    %p200 = scmp.lt.s32.totalorder %s10, 3
    %p201 = pnand %p199, %p200
    %p202 = pneg %p201
    // Predicated region
    $region33: #{contrastive_loss_direction.1} parent=5 // pred_check
      _
    $region34: #{contrastive_loss_direction.1} parent=5 // pred_check_branch
      %204 = sbr.rel (%p201) target = $region36
    $region35: #{contrastive_loss_direction.1} parent=5 // pred_region
      %s205 = ssub.s32 %s10, 1
      %s206 = smul.u32 2, %s20
      %p207 = scmp.lt.s32.totalorder %s19, 1
      %s208 = scalar_select %p207, %s19, 1
      %p209 = scmp.lt.s32.totalorder %s206, 1
      %s210 = scalar_select %p209, %s206, 1
      %s211 = smul.addr %s208, 64
      %s212 = sadd.s32 %s210, %s211
      %s213 = smul.addr %s212, 4
      %s214 = scalar_lea.vmem %s0, %s213
      %p215 = pneg %p50
      %p216 = pneg %p47
      %s217 = smul.u32 2, %s20
      %p218 = scmp.lt.s32.totalorder %s19, 1
      %s219 = scalar_select %p218, %s19, 1
      %p220 = scmp.lt.s32.totalorder %s217, 1
      %s221 = scalar_select %p220, %s217, 1
      %s222 = smul.addr %s219, 64
      %s223 = sadd.s32 %s221, %s222
      %s224 = smul.addr %s223, 4
      %s225 = scalar_lea.vmem %s1, %s224
      %p226 = pneg %p78
      %p227 = pneg %p75
      %p228 = pneg %p99
      %p229 = pneg %p96
      %p230 = pneg %p120
      %p231 = pneg %p117
      %p232 = pneg %p148
      %p233 = pneg %p145
      %s234 = smul.u32 2, %s20
      %p235 = scmp.lt.s32.totalorder %s19, 1
      %s236 = scalar_select %p235, %s19, 1
      %p237 = scmp.lt.s32.totalorder %s234, 1
      %s238 = scalar_select %p237, %s234, 1
      %s239 = smul.addr %s236, 2
      %s240 = sadd.s32 %s238, %s239
      %s241 = scalar_lea.vmem %s4, %s240
      %s242 = smul.u32 2, %s20
      %p243 = scmp.lt.s32.totalorder %s19, 1
      %s244 = scalar_select %p243, %s19, 1
      %p245 = scmp.lt.s32.totalorder %s242, 1
      %s246 = scalar_select %p245, %s242, 1
      %s247 = smul.addr %s244, 64
      %s248 = sadd.s32 %s246, %s247
      %s249 = smul.addr %s248, 4
      %s250 = scalar_lea.vmem %s0, %s249
      %s251 = smul.u32 2, %s20
      %s252 = smul.u32 2, %s20
      %p253 = scmp.lt.s32.totalorder %s19, 1
      %s254 = scalar_select %p253, %s19, 1
      %p255 = scmp.lt.s32.totalorder %s252, 1
      %s256 = scalar_select %p255, %s252, 1
      %s257 = smul.addr %s254, 64
      %s258 = sadd.s32 %s256, %s257
      %s259 = smul.addr %s258, 4
      %s260 = scalar_lea.vmem %s1, %s259
      %s261 = smul.u32 2, %s20
      %s262 = smul.u32 2, %s20
      %p263 = scmp.lt.s32.totalorder %s19, 1
      %s264 = scalar_select %p263, %s19, 1
      %p265 = scmp.lt.s32.totalorder %s262, 1
      %s266 = scalar_select %p265, %s262, 1
      %s267 = smul.addr %s264, 2
      %s268 = sadd.s32 %s266, %s267
      %s269 = scalar_lea.vmem %s4, %s268
      %s270 = smul.u32 2, %s20
      %v271 = vld [vmem:[%s2] sm:$0xff]
      %v272 = vld [vmem:[%s250] sm:$0xff]
      %v273 = vld [vmem:[%s250 + $0x8] sm:$0xff]
      %v274 = vld [vmem:[%s250 + $0x10] sm:$0xff]
      %v275 = vld [vmem:[%s250 + $0x18] sm:$0xff]
      %v276 = vld [vmem:[%s250 + $0x20] sm:$0xff]
      %v277 = vld [vmem:[%s250 + $0x28] sm:$0xff]
      %v278 = vld [vmem:[%s250 + $0x30] sm:$0xff]
      %v279 = vld [vmem:[%s250 + $0x38] sm:$0xff]
      %v280 = vld [vmem:[%s250 + $0x40] sm:$0xff]
      %v281 = vld [vmem:[%s250 + $0x48] sm:$0xff]
      %v282 = vld [vmem:[%s250 + $0x50] sm:$0xff]
      %v283 = vld [vmem:[%s250 + $0x58] sm:$0xff]
      %v284 = vld [vmem:[%s250 + $0x60] sm:$0xff]
      %v285 = vld [vmem:[%s250 + $0x68] sm:$0xff]
      %v286 = vld [vmem:[%s250 + $0x70] sm:$0xff]
      %v287 = vld [vmem:[%s250 + $0x78] sm:$0xff]
      %v288 = vld [vmem:[%s250 + $0x80] sm:$0xff]
      %v289 = vld [vmem:[%s250 + $0x88] sm:$0xff]
      %v290 = vld [vmem:[%s250 + $0x90] sm:$0xff]
      %v291 = vld [vmem:[%s250 + $0x98] sm:$0xff]
      %v292 = vld [vmem:[%s250 + $0xa0] sm:$0xff]
      %v293 = vld [vmem:[%s250 + $0xa8] sm:$0xff]
      %v294 = vld [vmem:[%s250 + $0xb0] sm:$0xff]
      %v295 = vld [vmem:[%s250 + $0xb8] sm:$0xff]
      %v296 = vld [vmem:[%s250 + $0xc0] sm:$0xff]
      %v297 = vld [vmem:[%s250 + $0xc8] sm:$0xff]
      %v298 = vld [vmem:[%s250 + $0xd0] sm:$0xff]
      %v299 = vld [vmem:[%s250 + $0xd8] sm:$0xff]
      %v300 = vld [vmem:[%s250 + $0xe0] sm:$0xff]
      %v301 = vld [vmem:[%s250 + $0xe8] sm:$0xff]
      %v302 = vld [vmem:[%s250 + $0xf0] sm:$0xff]
      %v303 = vld [vmem:[%s250 + $0xf8] sm:$0xff]
      %v304 = vld [vmem:[%s3] sm:$0xff]
      %306 = vset.pattern.permute.xlu0 0
      %307 = vperm.xlu0 %306, %v304
      %v308 = vpop.permute.xlu0 %307
      %v311 = vunpack.c.l.b16 %v271
      %v312 = vunpack.c.h.b16 %v271
      %v313 = vpack.c.b16 %v311, %v311
      %v314 = vpack.c.b16 %v312, %v312
      %v349 = vunpack.c.l.b16 %v272
      %v350 = vunpack.c.h.b16 %v272
      %v351 = vunpack.c.l.b16 %v273
      %v352 = vunpack.c.h.b16 %v273
      %v353 = vunpack.c.l.b16 %v274
      %v354 = vunpack.c.h.b16 %v274
      %v355 = vunpack.c.l.b16 %v275
      %v356 = vunpack.c.h.b16 %v275
      %v357 = vunpack.c.l.b16 %v276
      %v358 = vunpack.c.h.b16 %v276
      %v359 = vunpack.c.l.b16 %v277
      %v360 = vunpack.c.h.b16 %v277
      %v361 = vunpack.c.l.b16 %v278
      %v362 = vunpack.c.h.b16 %v278
      %v363 = vunpack.c.l.b16 %v279
      %v364 = vunpack.c.h.b16 %v279
      %v365 = vunpack.c.l.b16 %v280
      %v366 = vunpack.c.h.b16 %v280
      %v367 = vunpack.c.l.b16 %v281
      %v368 = vunpack.c.h.b16 %v281
      %v369 = vunpack.c.l.b16 %v282
      %v370 = vunpack.c.h.b16 %v282
      %v371 = vunpack.c.l.b16 %v283
      %v372 = vunpack.c.h.b16 %v283
      %v373 = vunpack.c.l.b16 %v284
      %v374 = vunpack.c.h.b16 %v284
      %v375 = vunpack.c.l.b16 %v285
      %v376 = vunpack.c.h.b16 %v285
      %v377 = vunpack.c.l.b16 %v286
      %v378 = vunpack.c.h.b16 %v286
      %v379 = vunpack.c.l.b16 %v287
      %v380 = vunpack.c.h.b16 %v287
      %v381 = vunpack.c.l.b16 %v288
      %v382 = vunpack.c.h.b16 %v288
      %v383 = vunpack.c.l.b16 %v289
      %v384 = vunpack.c.h.b16 %v289
      %v385 = vunpack.c.l.b16 %v290
      %v386 = vunpack.c.h.b16 %v290
      %v387 = vunpack.c.l.b16 %v291
      %v388 = vunpack.c.h.b16 %v291
      %v389 = vunpack.c.l.b16 %v292
      %v390 = vunpack.c.h.b16 %v292
      %v391 = vunpack.c.l.b16 %v293
      %v392 = vunpack.c.h.b16 %v293
      %v393 = vunpack.c.l.b16 %v294
      %v394 = vunpack.c.h.b16 %v294
      %v395 = vunpack.c.l.b16 %v295
      %v396 = vunpack.c.h.b16 %v295
      %v397 = vunpack.c.l.b16 %v296
      %v398 = vunpack.c.h.b16 %v296
      %v399 = vunpack.c.l.b16 %v297
      %v400 = vunpack.c.h.b16 %v297
      %v401 = vunpack.c.l.b16 %v298
      %v402 = vunpack.c.h.b16 %v298
      %v403 = vunpack.c.l.b16 %v299
      %v404 = vunpack.c.h.b16 %v299
      %v405 = vunpack.c.l.b16 %v300
      %v406 = vunpack.c.h.b16 %v300
      %v407 = vunpack.c.l.b16 %v301
      %v408 = vunpack.c.h.b16 %v301
      %v409 = vunpack.c.l.b16 %v302
      %v410 = vunpack.c.h.b16 %v302
      %v411 = vunpack.c.l.b16 %v303
      %v412 = vunpack.c.h.b16 %v303
      %v413 = vpack.c.b16 %v351, %v349
      %v414 = vpack.c.b16 %v352, %v350
      %v415 = vpack.c.b16 %v355, %v353
      %v416 = vpack.c.b16 %v356, %v354
      %v417 = vpack.c.b16 %v359, %v357
      %v418 = vpack.c.b16 %v360, %v358
      %v419 = vpack.c.b16 %v363, %v361
      %v420 = vpack.c.b16 %v364, %v362
      %v421 = vpack.c.b16 %v367, %v365
      %v422 = vpack.c.b16 %v368, %v366
      %v423 = vpack.c.b16 %v371, %v369
      %v424 = vpack.c.b16 %v372, %v370
      %v425 = vpack.c.b16 %v375, %v373
      %v426 = vpack.c.b16 %v376, %v374
      %v427 = vpack.c.b16 %v379, %v377
      %v428 = vpack.c.b16 %v380, %v378
      %v429 = vpack.c.b16 %v383, %v381
      %v430 = vpack.c.b16 %v384, %v382
      %v431 = vpack.c.b16 %v387, %v385
      %v432 = vpack.c.b16 %v388, %v386
      %v433 = vpack.c.b16 %v391, %v389
      %v434 = vpack.c.b16 %v392, %v390
      %v435 = vpack.c.b16 %v395, %v393
      %v436 = vpack.c.b16 %v396, %v394
      %v437 = vpack.c.b16 %v399, %v397
      %v438 = vpack.c.b16 %v400, %v398
      %v439 = vpack.c.b16 %v403, %v401
      %v440 = vpack.c.b16 %v404, %v402
      %v441 = vpack.c.b16 %v407, %v405
      %v442 = vpack.c.b16 %v408, %v406
      %v443 = vpack.c.b16 %v411, %v409
      %v444 = vpack.c.b16 %v412, %v410
      %477 = vmatpush.bf16.msra.mxu0 %v427
      %478 = vmatpush.bf16.msra.mxu0 %v425
      %479 = vmatpush.bf16.msra.mxu0 %v423
      %480 = vmatpush.bf16.msra.mxu0 %v421
      %481 = vmatpush.bf16.msra.mxu0 %v419
      %482 = vmatpush.bf16.msra.mxu0 %v417
      %483 = vmatpush.bf16.msra.mxu0 %v415
      %484 = vmatpush.bf16.msra.mxu0 %v413
      %485 = vmatmul.bf16.gmra.mxu0 %v313
      %v486 = vpop.f32.mrf.mxu0
      %v487 = vadd.f32 %v308, %v486
      %v488 = vpop.f32.mrf.mxu0
      %489 = vdwg.mxu0
      %490 = vmatpush.bf16.msra.mxu0 %v443
      %491 = vmatpush.bf16.msra.mxu0 %v441
      %492 = vmatpush.bf16.msra.mxu0 %v439
      %493 = vmatpush.bf16.msra.mxu0 %v437
      %494 = vmatpush.bf16.msra.mxu0 %v435
      %495 = vmatpush.bf16.msra.mxu0 %v433
      %496 = vmatpush.bf16.msra.mxu0 %v431
      %497 = vmatpush.bf16.msra.mxu0 %v429
      %498 = vmatmul.bf16.gmra.mxu0 %v314
      %v499 = vpop.f32.mrf.mxu0
      %v500 = vadd.f32 %v487, %v499
      %v501 = vpop.f32.mrf.mxu0
      %502 = vdwg.mxu0
      %503 = vmatpush.bf16.msra.mxu0 %v428
      %504 = vmatpush.bf16.msra.mxu0 %v426
      %505 = vmatpush.bf16.msra.mxu0 %v424
      %506 = vmatpush.bf16.msra.mxu0 %v422
      %507 = vmatpush.bf16.msra.mxu0 %v420
      %508 = vmatpush.bf16.msra.mxu0 %v418
      %509 = vmatpush.bf16.msra.mxu0 %v416
      %510 = vmatpush.bf16.msra.mxu0 %v414
      %511 = vmatmul.bf16.gmra.mxu0 %v313
      %v512 = vpop.f32.mrf.mxu0
      %v513 = vadd.f32 %v308, %v512
      %v514 = vpop.f32.mrf.mxu0
      %515 = vdwg.mxu0
      %516 = vmatpush.bf16.msra.mxu0 %v444
      %517 = vmatpush.bf16.msra.mxu0 %v442
      %518 = vmatpush.bf16.msra.mxu0 %v440
      %519 = vmatpush.bf16.msra.mxu0 %v438
      %520 = vmatpush.bf16.msra.mxu0 %v436
      %521 = vmatpush.bf16.msra.mxu0 %v434
      %522 = vmatpush.bf16.msra.mxu0 %v432
      %523 = vmatpush.bf16.msra.mxu0 %v430
      %524 = vmatmul.bf16.gmra.mxu0 %v314
      %v525 = vpop.f32.mrf.mxu0
      %v526 = vadd.f32 %v513, %v525
      %v527 = vpop.f32.mrf.mxu0
      %528 = vdwg.mxu0
      %v529 = vld [vmem:[%s260] sm:$0xff]
      %v530 = vld [vmem:[%s260 + $0x8] sm:$0xff]
      %v531 = vld [vmem:[%s260 + $0x10] sm:$0xff]
      %v532 = vld [vmem:[%s260 + $0x18] sm:$0xff]
      %v533 = vld [vmem:[%s260 + $0x20] sm:$0xff]
      %v534 = vld [vmem:[%s260 + $0x28] sm:$0xff]
      %v535 = vld [vmem:[%s260 + $0x30] sm:$0xff]
      %v536 = vld [vmem:[%s260 + $0x38] sm:$0xff]
      %v537 = vld [vmem:[%s260 + $0x40] sm:$0xff]
      %v538 = vld [vmem:[%s260 + $0x48] sm:$0xff]
      %v539 = vld [vmem:[%s260 + $0x50] sm:$0xff]
      %v540 = vld [vmem:[%s260 + $0x58] sm:$0xff]
      %v541 = vld [vmem:[%s260 + $0x60] sm:$0xff]
      %v542 = vld [vmem:[%s260 + $0x68] sm:$0xff]
      %v543 = vld [vmem:[%s260 + $0x70] sm:$0xff]
      %v544 = vld [vmem:[%s260 + $0x78] sm:$0xff]
      %v545 = vld [vmem:[%s260 + $0x80] sm:$0xff]
      %v546 = vld [vmem:[%s260 + $0x88] sm:$0xff]
      %v547 = vld [vmem:[%s260 + $0x90] sm:$0xff]
      %v548 = vld [vmem:[%s260 + $0x98] sm:$0xff]
      %v549 = vld [vmem:[%s260 + $0xa0] sm:$0xff]
      %v550 = vld [vmem:[%s260 + $0xa8] sm:$0xff]
      %v551 = vld [vmem:[%s260 + $0xb0] sm:$0xff]
      %v552 = vld [vmem:[%s260 + $0xb8] sm:$0xff]
      %v553 = vld [vmem:[%s260 + $0xc0] sm:$0xff]
      %v554 = vld [vmem:[%s260 + $0xc8] sm:$0xff]
      %v555 = vld [vmem:[%s260 + $0xd0] sm:$0xff]
      %v556 = vld [vmem:[%s260 + $0xd8] sm:$0xff]
      %v557 = vld [vmem:[%s260 + $0xe0] sm:$0xff]
      %v558 = vld [vmem:[%s260 + $0xe8] sm:$0xff]
      %v559 = vld [vmem:[%s260 + $0xf0] sm:$0xff]
      %v560 = vld [vmem:[%s260 + $0xf8] sm:$0xff]
      %v593 = vunpack.c.l.b16 %v529
      %v594 = vunpack.c.h.b16 %v529
      %v595 = vunpack.c.l.b16 %v530
      %v596 = vunpack.c.h.b16 %v530
      %v597 = vunpack.c.l.b16 %v531
      %v598 = vunpack.c.h.b16 %v531
      %v599 = vunpack.c.l.b16 %v532
      %v600 = vunpack.c.h.b16 %v532
      %v601 = vunpack.c.l.b16 %v533
      %v602 = vunpack.c.h.b16 %v533
      %v603 = vunpack.c.l.b16 %v534
      %v604 = vunpack.c.h.b16 %v534
      %v605 = vunpack.c.l.b16 %v535
      %v606 = vunpack.c.h.b16 %v535
      %v607 = vunpack.c.l.b16 %v536
      %v608 = vunpack.c.h.b16 %v536
      %v609 = vunpack.c.l.b16 %v537
      %v610 = vunpack.c.h.b16 %v537
      %v611 = vunpack.c.l.b16 %v538
      %v612 = vunpack.c.h.b16 %v538
      %v613 = vunpack.c.l.b16 %v539
      %v614 = vunpack.c.h.b16 %v539
      %v615 = vunpack.c.l.b16 %v540
      %v616 = vunpack.c.h.b16 %v540
      %v617 = vunpack.c.l.b16 %v541
      %v618 = vunpack.c.h.b16 %v541
      %v619 = vunpack.c.l.b16 %v542
      %v620 = vunpack.c.h.b16 %v542
      %v621 = vunpack.c.l.b16 %v543
      %v622 = vunpack.c.h.b16 %v543
      %v623 = vunpack.c.l.b16 %v544
      %v624 = vunpack.c.h.b16 %v544
      %v625 = vunpack.c.l.b16 %v545
      %v626 = vunpack.c.h.b16 %v545
      %v627 = vunpack.c.l.b16 %v546
      %v628 = vunpack.c.h.b16 %v546
      %v629 = vunpack.c.l.b16 %v547
      %v630 = vunpack.c.h.b16 %v547
      %v631 = vunpack.c.l.b16 %v548
      %v632 = vunpack.c.h.b16 %v548
      %v633 = vunpack.c.l.b16 %v549
      %v634 = vunpack.c.h.b16 %v549
      %v635 = vunpack.c.l.b16 %v550
      %v636 = vunpack.c.h.b16 %v550
      %v637 = vunpack.c.l.b16 %v551
      %v638 = vunpack.c.h.b16 %v551
      %v639 = vunpack.c.l.b16 %v552
      %v640 = vunpack.c.h.b16 %v552
      %v641 = vunpack.c.l.b16 %v553
      %v642 = vunpack.c.h.b16 %v553
      %v643 = vunpack.c.l.b16 %v554
      %v644 = vunpack.c.h.b16 %v554
      %v645 = vunpack.c.l.b16 %v555
      %v646 = vunpack.c.h.b16 %v555
      %v647 = vunpack.c.l.b16 %v556
      %v648 = vunpack.c.h.b16 %v556
      %v649 = vunpack.c.l.b16 %v557
      %v650 = vunpack.c.h.b16 %v557
      %v651 = vunpack.c.l.b16 %v558
      %v652 = vunpack.c.h.b16 %v558
      %v653 = vunpack.c.l.b16 %v559
      %v654 = vunpack.c.h.b16 %v559
      %v655 = vunpack.c.l.b16 %v560
      %v656 = vunpack.c.h.b16 %v560
      %v657 = vpack.c.b16 %v595, %v593
      %v658 = vpack.c.b16 %v596, %v594
      %v659 = vpack.c.b16 %v599, %v597
      %v660 = vpack.c.b16 %v600, %v598
      %v661 = vpack.c.b16 %v603, %v601
      %v662 = vpack.c.b16 %v604, %v602
      %v663 = vpack.c.b16 %v607, %v605
      %v664 = vpack.c.b16 %v608, %v606
      %v665 = vpack.c.b16 %v611, %v609
      %v666 = vpack.c.b16 %v612, %v610
      %v667 = vpack.c.b16 %v615, %v613
      %v668 = vpack.c.b16 %v616, %v614
      %v669 = vpack.c.b16 %v619, %v617
      %v670 = vpack.c.b16 %v620, %v618
      %v671 = vpack.c.b16 %v623, %v621
      %v672 = vpack.c.b16 %v624, %v622
      %v673 = vpack.c.b16 %v627, %v625
      %v674 = vpack.c.b16 %v628, %v626
      %v675 = vpack.c.b16 %v631, %v629
      %v676 = vpack.c.b16 %v632, %v630
      %v677 = vpack.c.b16 %v635, %v633
      %v678 = vpack.c.b16 %v636, %v634
      %v679 = vpack.c.b16 %v639, %v637
      %v680 = vpack.c.b16 %v640, %v638
      %v681 = vpack.c.b16 %v643, %v641
      %v682 = vpack.c.b16 %v644, %v642
      %v683 = vpack.c.b16 %v647, %v645
      %v684 = vpack.c.b16 %v648, %v646
      %v685 = vpack.c.b16 %v651, %v649
      %v686 = vpack.c.b16 %v652, %v650
      %v687 = vpack.c.b16 %v655, %v653
      %v688 = vpack.c.b16 %v656, %v654
      %721 = vmatpush.bf16.msra.mxu0 %v671
      %722 = vmatpush.bf16.msra.mxu0 %v669
      %723 = vmatpush.bf16.msra.mxu0 %v667
      %724 = vmatpush.bf16.msra.mxu0 %v665
      %725 = vmatpush.bf16.msra.mxu0 %v663
      %726 = vmatpush.bf16.msra.mxu0 %v661
      %727 = vmatpush.bf16.msra.mxu0 %v659
      %728 = vmatpush.bf16.msra.mxu0 %v657
      %729 = vmatmul.bf16.gmra.mxu0 %v313
      %v730 = vpop.f32.mrf.mxu0
      %v731 = vadd.f32 %v308, %v730
      %v732 = vpop.f32.mrf.mxu0
      %733 = vdwg.mxu0
      %734 = vmatpush.bf16.msra.mxu0 %v687
      %735 = vmatpush.bf16.msra.mxu0 %v685
      %736 = vmatpush.bf16.msra.mxu0 %v683
      %737 = vmatpush.bf16.msra.mxu0 %v681
      %738 = vmatpush.bf16.msra.mxu0 %v679
      %739 = vmatpush.bf16.msra.mxu0 %v677
      %740 = vmatpush.bf16.msra.mxu0 %v675
      %741 = vmatpush.bf16.msra.mxu0 %v673
      %742 = vmatmul.bf16.gmra.mxu0 %v314
      %v743 = vpop.f32.mrf.mxu0
      %v744 = vadd.f32 %v731, %v743
      %v745 = vpop.f32.mrf.mxu0
      %746 = vdwg.mxu0
      %747 = vmatpush.bf16.msra.mxu0 %v672
      %748 = vmatpush.bf16.msra.mxu0 %v670
      %749 = vmatpush.bf16.msra.mxu0 %v668
      %750 = vmatpush.bf16.msra.mxu0 %v666
      %751 = vmatpush.bf16.msra.mxu0 %v664
      %752 = vmatpush.bf16.msra.mxu0 %v662
      %753 = vmatpush.bf16.msra.mxu0 %v660
      %754 = vmatpush.bf16.msra.mxu0 %v658
      %755 = vmatmul.bf16.gmra.mxu0 %v313
      %v756 = vpop.f32.mrf.mxu0
      %v757 = vadd.f32 %v308, %v756
      %v758 = vpop.f32.mrf.mxu0
      %759 = vdwg.mxu0
      %760 = vmatpush.bf16.msra.mxu0 %v688
      %761 = vmatpush.bf16.msra.mxu0 %v686
      %762 = vmatpush.bf16.msra.mxu0 %v684
      %763 = vmatpush.bf16.msra.mxu0 %v682
      %764 = vmatpush.bf16.msra.mxu0 %v680
      %765 = vmatpush.bf16.msra.mxu0 %v678
      %766 = vmatpush.bf16.msra.mxu0 %v676
      %767 = vmatpush.bf16.msra.mxu0 %v674
      %768 = vmatmul.bf16.gmra.mxu0 %v314
      %v769 = vpop.f32.mrf.mxu0
      %v770 = vadd.f32 %v757, %v769
      %v771 = vpop.f32.mrf.mxu0
      %772 = vdwg.mxu0
      %v773 = vmul.f32 %v500, %v744
      %v774 = vmul.f32 %v526, %v770
      %v775 = vrot.slane %v773, 4
      %v776 = vadd.f32 %v773, %v775
      %v777 = vrot.slane %v776, 2
      %v778 = vadd.f32 %v776, %v777
      %v779 = vrot.slane %v778, 1
      %v780 = vadd.f32 %v778, %v779
      %v781 = vrot.slane %v774, 4
      %v782 = vadd.f32 %v774, %v781
      %v783 = vrot.slane %v782, 2
      %v784 = vadd.f32 %v782, %v783
      %v785 = vrot.slane %v784, 1
      %v786 = vadd.f32 %v784, %v785
      %v787 = vmul.f32 %v500, %v500
      %v788 = vmul.f32 %v526, %v526
      %v789 = vrot.slane %v787, 4
      %v790 = vadd.f32 %v787, %v789
      %v791 = vrot.slane %v790, 2
      %v792 = vadd.f32 %v790, %v791
      %v793 = vrot.slane %v792, 1
      %v794 = vadd.f32 %v792, %v793
      %v795 = vrot.slane %v788, 4
      %v796 = vadd.f32 %v788, %v795
      %v797 = vrot.slane %v796, 2
      %v798 = vadd.f32 %v796, %v797
      %v799 = vrot.slane %v798, 1
      %v800 = vadd.f32 %v798, %v799
      %v801 = vmul.f32 %v744, %v744
      %v802 = vmul.f32 %v770, %v770
      %v803 = vrot.slane %v801, 4
      %v804 = vadd.f32 %v801, %v803
      %v805 = vrot.slane %v804, 2
      %v806 = vadd.f32 %v804, %v805
      %v807 = vrot.slane %v806, 1
      %v808 = vadd.f32 %v806, %v807
      %v809 = vrot.slane %v802, 4
      %v810 = vadd.f32 %v802, %v809
      %v811 = vrot.slane %v810, 2
      %v812 = vadd.f32 %v810, %v811
      %v813 = vrot.slane %v812, 1
      %v814 = vadd.f32 %v812, %v813
      %v815 = vmul.f32 %v794, %v808
      %v816 = vmul.f32 %v800, %v814
      %v817 = vmax.f32 %v815, 1e-16
      %v818 = vmax.f32 %v816, 1e-16
      %v819 = vrsqrt.pop %v817
      %v820 = vmul.f32 %v819, %v817
      %v821 = vmul.f32 %v820, %v819
      %v822 = vmul.f32 0.5, %v821
      %v823 = vsub.f32 1.5, %v822
      %v824 = vmul.f32 %v819, %v823
      %vm825 = vweird.f32 %v817
      %vm826 = vweird.f32 %v819
      %vm827 = vmor %vm825, %vm826
      %v828 = vsel %vm827, %v819, %v824
      %v829 = vrsqrt.pop %v818
      %v830 = vmul.f32 %v829, %v818
      %v831 = vmul.f32 %v830, %v829
      %v832 = vmul.f32 0.5, %v831
      %v833 = vsub.f32 1.5, %v832
      %v834 = vmul.f32 %v829, %v833
      %vm835 = vweird.f32 %v818
      %vm836 = vweird.f32 %v829
      %vm837 = vmor %vm835, %vm836
      %v838 = vsel %vm837, %v829, %v834
      %v839 = vmul.f32 %v780, %v828
      %v840 = vmul.f32 %v786, %v838
      %v843 = vrot.slane %v840, 7
      %vm844 = vcmask 1040384
      %v845 = vsel %vm844, %v839, %v843
      %v847 = vlaneseq
      %vm848 = vcmp.ge.s32.totalorder %v847, 0
      %vm849 = vcmp.lt.s32.totalorder %v847, 256
      %vm850 = vmand %vm848, %vm849
      %851 = vst.msk [vmem:[%s269] sm:$0x3] %vm850, %v845
      %s852 = smul.u32 2, %s20
      %p853 = scmp.lt.s32.totalorder %s19, 1
      %s854 = scalar_select %p853, %s19, 1
      %p855 = scmp.lt.s32.totalorder %s852, 1
      %s856 = scalar_select %p855, %s852, 1
      %s857 = smul.addr %s854, 2
      %s858 = sadd.s32 %s856, %s857
      %s859 = scalar_lea.vmem %s4, %s858
      // Predicated region
      $region37: #{contrastive_loss_direction.1} parent=35 // pred_check
        %p860 = pneg %p145
      $region38: #{contrastive_loss_direction.1} parent=35 // pred_check_branch
        %862 = sbr.rel (%p860) target = $region40
      $region39: #{contrastive_loss_direction.1} parent=35 // pred_region
        %s863 = smul.u32 2, %s20
      $region40: #{contrastive_loss_direction.1} parent=35 // pred_fallthru
        _
    $region36: #{contrastive_loss_direction.1} parent=5 // pred_fallthru
      _
    %p864 = scmp.le.s32.totalorder 2, %s10
    // Predicated region
    $region41: #{contrastive_loss_direction.1} parent=5 // pred_check
      %p865 = pneg %p864
    $region42: #{contrastive_loss_direction.1} parent=5 // pred_check_branch
      %867 = sbr.rel (%p865) target = $region44
    $region43: #{contrastive_loss_direction.1} parent=5 // pred_region
      %s868 = ssub.s32 %s10, 2
      // Predicated region
      $region45: #{contrastive_loss_direction.1} parent=43 // pred_check
        %p869 = pneg %p151
      $region46: #{contrastive_loss_direction.1} parent=43 // pred_check_branch
        %871 = sbr.rel (%p869) target = $region48
      $region47: #{contrastive_loss_direction.1} parent=43 // pred_region
        %s872 = smul.u32 2, %s22
        %p873 = scmp.lt.s32.totalorder %s21, 1
        %s874 = scalar_select %p873, %s21, 1
        %p875 = scmp.lt.s32.totalorder %s872, 1
        %s876 = scalar_select %p875, %s872, 1
        %s877 = smul.addr %s874, 2
        %s878 = sadd.s32 %s876, %s877
        %s879 = scalar_lea.vmem %s4, %s878
      $region48: #{contrastive_loss_direction.1} parent=43 // pred_fallthru
        _
    $region44: #{contrastive_loss_direction.1} parent=5 // pred_fallthru
      _
  $region6: #{contrastive_loss_direction.1} parent=0 // loop_footer
    %s14 = sadd.s32 1, %s10
  $region7: #{contrastive_loss_direction.1} parent=0 // loop_footer_branch
    %9 = sbr.rel target = $region3
  $region8: #{contrastive_loss_direction.1} parent=0 // loop_exit
    _

</llo_original>
